<compile_context>
chip_gen: v6e
topology: v6e:2x2x1
jax: 0.10.0
libtpu: 0.0.40
codegen_flags: <defaults>
</compile_context>

<pallas_src>
import functools

import jax
import jax.numpy as jnp
from jax.experimental import pallas as pl
from jax.experimental.pallas import tpu as pltpu


def _round_up(n: int, m: int) -> int:
    return ((n + m - 1) // m) * m


# ----------------------------- Pallas kernel ------------------------------- #
def liresmlp_kernel(x_ref, w_ref, b_ref, o_ref, *, mxu_dtype):
    """One grid step = one batch tile; the depth loop is fully unrolled inside.

    x_ref: (TB, Fp)          activation tile (input dtype)
    w_ref: (depth, Fp, Fp)   all layers' weights, (in, out) layout, mxu dtype
    b_ref: (depth, 1, Fp)    all layers' biases, f32
    o_ref: (TB, Fp)          output tile
    """
    depth = w_ref.shape[0]

    # Carry activations in the MXU dtype between layers: bit-identical matmul
    # inputs vs. casting at the dot, but half the live activation bytes.
    x = x_ref[...].astype(mxu_dtype)

    # Static (unrolled) depth loop: depth is a compile-time constant, so the
    # LLO scheduler can overlap adjacent layers' MXU/VPU work.
    for d in range(depth):
        # W was pre-transposed host-side to (in, out) layout, so this is the
        # native ((1,),(0,)) contraction -- no weight-tile transpose on the XLU.
        y = jnp.dot(x, w_ref[d], preferred_element_type=jnp.float32)
        y = jnp.maximum(y + b_ref[d], 0.0)          # f32 bias add + ReLU (VPU)
        x = y.astype(mxu_dtype) if d + 1 < depth else y   # keep last layer f32

    # TODO(synk): for very large TB*F, split the tile into 2 independent
    # sub-streams so one stream's VPU epilogue overlaps the other's matmuls.
    o_ref[...] = x.astype(o_ref.dtype)              # single lane-dense store


# ----------------------- parameter preparation (cached) -------------------- #
def prepare_params(W, bias, *, mxu_dtype=jnp.bfloat16):
    """Pad/cast/transpose parameters ONCE; reuse across forward calls.

    W:    (depth, F, F) orthonormalized weights in PyTorch F.linear (out, in) layout
    bias: (depth, F)
    Returns (w_p, b_p):
      w_p: (depth, Fp, Fp) in (in, out) layout, mxu dtype, zero padded
      b_p: (depth, 1, Fp)  f32, zero padded
    """
    depth, F, _ = W.shape
    Fp = _round_up(F, 128)
    # Pre-transpose to (in, out) so the kernel needs no transpose of weight tiles.
    w_t = jnp.swapaxes(W, 1, 2).astype(mxu_dtype)
    w_p = jnp.zeros((depth, Fp, Fp), mxu_dtype).at[:, :F, :F].set(w_t)
    b_p = jnp.zeros((depth, 1, Fp), jnp.float32).at[:, 0, :F].set(
        bias.astype(jnp.float32))
    return w_p, b_p


# ------------------------------- wrapper ------------------------------------ #
def liresmlp_pallas(x, w_p, b_p, *, mxu_dtype=jnp.bfloat16, batch_tile=None):
    """Fused depth-loop of linear+ReLU in a single pallas_call.

    x:   (B, F)  activations
    w_p: (depth, Fp, Fp) prepared weights (see prepare_params)
    b_p: (depth, 1, Fp)  prepared biases
    """
    depth, Fp, _ = w_p.shape
    B, F = x.shape

    itemsize = jnp.dtype(x.dtype).itemsize
    # Sublane multiple for the input dtype; at least 16 rows when MXU operands
    # are 16-bit (packed sublanes).
    sub = {4: 8, 2: 16, 1: 32}.get(itemsize, 8)
    if jnp.dtype(mxu_dtype).itemsize == 2:
        sub = max(sub, 16)

    # Larger batch tiles when F is small: a longer LHS stream amortizes the
    # 256x256 MXU fill/drain on v6e/v7x; activation VMEM is tiny at small F.
    if batch_tile is None:
        batch_tile = 512 if Fp <= 512 else (256 if Fp <= 1024 else 128)

    Bp_min = _round_up(B, sub)
    if Bp_min >= 2 * sub:
        # Guarantee >= 2 batch tiles so both v7x TensorCores get work.
        TB = min(batch_tile, _round_up(pl.cdiv(Bp_min, 2), sub))
    else:
        TB = Bp_min
    Bp = _round_up(B, TB)
    grid = (Bp // TB,)

    # Zero padding keeps semantics exact: padded weight rows/cols and biases are
    # zero, so padded lanes/rows stay identically zero through every ReLU layer.
    x_p = jnp.zeros((Bp, Fp), x.dtype).at[:B, :F].set(x)

    # Explicit VMEM limit sized from the footprint (worst case: double-buffered
    # weights), with headroom for Mosaic internal scratch.
    w_bytes = int(w_p.size) * jnp.dtype(w_p.dtype).itemsize
    b_bytes = int(b_p.size) * 4
    io_bytes = 2 * 2 * TB * Fp * itemsize            # in + out, double buffered
    act_bytes = 2 * TB * Fp * 4                      # f32 intermediates (rough)
    needed = 2 * w_bytes + 2 * b_bytes + io_bytes + act_bytes
    vmem_limit = int(min(128 << 20, needed + (16 << 20)))
    # TODO(synk): once depth*Fp*Fp*2B approaches ~half of VMEM (v7x: 64 MiB
    # physical, v5e: 16 MiB scoped default), stream weights per layer via
    # memory_space=pl.ANY + a manual 2-slot make_async_copy double buffer
    # instead of holding the full slab resident.

    cost = pl.CostEstimate(
        flops=2 * Bp * depth * Fp * Fp,
        transcendentals=0,
        bytes_accessed=w_bytes + b_bytes + Bp * Fp * itemsize * 2)

    kernel = functools.partial(liresmlp_kernel, mxu_dtype=mxu_dtype)
    x_spec = pl.BlockSpec((TB, Fp), lambda i: (i, 0))
    o_spec = pl.BlockSpec((TB, Fp), lambda i: (i, 0))
    compiler_params = pltpu.CompilerParams(
        dimension_semantics=("parallel",),           # batch tiles are independent
        vmem_limit_bytes=vmem_limit)

    def _run(single_buffer_params: bool):
        # Weights/biases have a constant index_map -> they never change across
        # grid steps; single-buffering them halves their VMEM footprint.
        kw = {"pipeline_mode": pl.Buffered(1)} if single_buffer_params else {}
        w_spec = pl.BlockSpec((depth, Fp, Fp), lambda i: (0, 0, 0), **kw)
        b_spec = pl.BlockSpec((depth, 1, Fp), lambda i: (0, 0, 0), **kw)
        return pl.pallas_call(
            kernel,
            out_shape=jax.ShapeDtypeStruct((Bp, Fp), x.dtype),
            grid_spec=pltpu.PrefetchScalarGridSpec(
                num_scalar_prefetch=0,
                grid=grid,
                in_specs=[x_spec, w_spec, b_spec],
                out_specs=o_spec,
            ),
            compiler_params=compiler_params,
            cost_estimate=cost,
        )(x_p, w_p, b_p)

    try:
        out_p = _run(True)
    except Exception:  # pragma: no cover - fall back if pipeline_mode unsupported
        out_p = _run(False)

    return out_p[:B, :F]


# ------------------------- parameter construction (glue) ------------------- #
def get_weight(weights, gamma, scale):
    """JAX equivalent of LiResMLP.get_weight() (non-distributed branch)."""
    depth, F, _ = weights.shape
    W = jnp.eye(F, dtype=jnp.float32)[None] + weights * gamma * scale
    # CholeskyOrth: row-orthonormalize each W[d] via L^{-1} W, L = chol(W W^T).
    # TODO(synk): reference uses an iterative CholeskyOrth (num_lc_iter) whose
    # exact definition is not in the snippet; an exact Cholesky solve is used here.
    gram = jnp.einsum('dij,dkj->dik', W, W)
    L = jnp.linalg.cholesky(gram)
    W = jax.vmap(
        lambda l, w: jax.scipy.linalg.solve_triangular(l, w, lower=True))(L, W)
    return W


def ref_forward(x, W, bias, mxu_dtype=None):
    """Pure-JAX reference.  mxu_dtype mirrors the kernel's bf16 MXU operands."""
    for d in range(W.shape[0]):
        if mxu_dtype is None:
            y = x @ W[d].T
        else:
            y = jnp.dot(x.astype(mxu_dtype), W[d].T.astype(mxu_dtype),
                        preferred_element_type=jnp.float32)
        x = jnp.maximum(y + bias[d], 0.0)
    return x


# ----------------------------------- main ----------------------------------- #
if __name__ == "__main__":
    depth = 4
    num_features = 32
    batch = 8

    key = jax.random.PRNGKey(0)
    kw, kx = jax.random.split(key)

    # Deterministic parameter init, matching LiResMLP.__init__ shapes.
    weights = jax.random.normal(kw, (depth, num_features, num_features),
                                dtype=jnp.float32) / num_features
    gamma = jnp.ones((depth, num_features, 1), dtype=jnp.float32)
    bias = jnp.zeros((depth, num_features), dtype=jnp.float32)
    scale = depth ** (-0.5)

    x = jax.random.normal(kx, (batch, num_features), dtype=jnp.float32)

    W = get_weight(weights, gamma, scale)

    # Parameters padded/cast/transposed ONCE; only x is padded per call.
    w_p, b_p = prepare_params(W, bias, mxu_dtype=jnp.bfloat16)

    out = liresmlp_pallas(x, w_p, b_p, mxu_dtype=jnp.bfloat16)
    out = jax.block_until_ready(out)

    ref_bf16 = ref_forward(x, W, bias, mxu_dtype=jnp.bfloat16)  # same numerics path
    ref_f32 = ref_forward(x, W, bias)                           # exact f32 reference

    assert out.shape == (batch, num_features)
    assert jnp.allclose(out, ref_bf16, atol=2e-3, rtol=2e-3), "mismatch vs bf16 reference"
    assert jnp.allclose(out, ref_f32, atol=5e-2, rtol=5e-2), "mismatch vs f32 reference"

    print("KERNEL_OK")
</pallas_src>

<mosaic_0001>
module attributes {stable_mosaic.version = 11 : i64} {
  func.func @liresmlp_kernel(%arg0: i32, %arg1: memref<16x128xf32, #tpu.memory_space<vmem>>, %arg2: memref<4x128x128xbf16, #tpu.memory_space<vmem>>, %arg3: memref<4x1x128xf32, #tpu.memory_space<vmem>>, %arg4: memref<16x128xf32, #tpu.memory_space<vmem>>) attributes {dimension_semantics = [#tpu.dimension_semantics<parallel>], iteration_bounds = array<i64: 1>, scalar_prefetch = 0 : i64, scratch_operands = 0 : i64, tpu.core_type = #tpu.core_type<tc>, window_params = [{transform_indices = @transform_0, window_bounds = array<i64: 16, 128>}, {pipeline_mode = #tpu.pipeline_mode<synchronous>, transform_indices = @transform_1, window_bounds = array<i64: 4, 128, 128>}, {pipeline_mode = #tpu.pipeline_mode<synchronous>, transform_indices = @transform_2, window_bounds = array<i64: 4, 1, 128>}, {transform_indices = @transform_3, window_bounds = array<i64: 16, 128>}]} {
    %c0 = arith.constant 0 : index
    %c0_0 = arith.constant 0 : index
    %0 = vector.load %arg1[%c0, %c0_0] : memref<16x128xf32, #tpu.memory_space<vmem>>, vector<16x128xf32>
    %1 = arith.truncf %0 : vector<16x128xf32> to vector<16x128xbf16>
    %c0_1 = arith.constant 0 : index
    %c0_2 = arith.constant 0 : index
    %c0_3 = arith.constant 0 : index
    %2 = vector.load %arg2[%c0_1, %c0_2, %c0_3] : memref<4x128x128xbf16, #tpu.memory_space<vmem>>, vector<1x128x128xbf16>
    %3 = vector.shape_cast %2 : vector<1x128x128xbf16> to vector<128x128xbf16>
    %cst = arith.constant dense<0.000000e+00> : vector<16x128xf32>
    %4 = tpu.matmul %1, %3, %cst {dimension_numbers = #tpu.dot_dimension_numbers<[1], [0], [0], [1], [0, 0, 1, 1], [], []>} : vector<16x128xbf16>, vector<128x128xbf16>, vector<16x128xf32> -> vector<16x128xf32>
    %c0_4 = arith.constant 0 : index
    %c0_5 = arith.constant 0 : index
    %c0_6 = arith.constant 0 : index
    %5 = vector.load %arg3[%c0_4, %c0_5, %c0_6] : memref<4x1x128xf32, #tpu.memory_space<vmem>>, vector<1x1x128xf32>
    %6 = vector.shape_cast %5 : vector<1x1x128xf32> to vector<1x128xf32>
    %7 = vector.broadcast %6 : vector<1x128xf32> to vector<16x128xf32>
    %8 = arith.addf %4, %7 : vector<16x128xf32>
    %cst_7 = arith.constant 0.000000e+00 : f32
    %9 = vector.broadcast %cst_7 : f32 to vector<16x128xf32>
    %10 = arith.maximumf %8, %9 : vector<16x128xf32>
    %11 = arith.truncf %10 : vector<16x128xf32> to vector<16x128xbf16>
    %c1 = arith.constant 1 : index
    %c0_8 = arith.constant 0 : index
    %c0_9 = arith.constant 0 : index
    %12 = vector.load %arg2[%c1, %c0_8, %c0_9] : memref<4x128x128xbf16, #tpu.memory_space<vmem>>, vector<1x128x128xbf16>
    %13 = vector.shape_cast %12 : vector<1x128x128xbf16> to vector<128x128xbf16>
    %cst_10 = arith.constant dense<0.000000e+00> : vector<16x128xf32>
    %14 = tpu.matmul %11, %13, %cst_10 {dimension_numbers = #tpu.dot_dimension_numbers<[1], [0], [0], [1], [0, 0, 1, 1], [], []>} : vector<16x128xbf16>, vector<128x128xbf16>, vector<16x128xf32> -> vector<16x128xf32>
    %c1_11 = arith.constant 1 : index
    %c0_12 = arith.constant 0 : index
    %c0_13 = arith.constant 0 : index
    %15 = vector.load %arg3[%c1_11, %c0_12, %c0_13] : memref<4x1x128xf32, #tpu.memory_space<vmem>>, vector<1x1x128xf32>
    %16 = vector.shape_cast %15 : vector<1x1x128xf32> to vector<1x128xf32>
    %17 = vector.broadcast %16 : vector<1x128xf32> to vector<16x128xf32>
    %18 = arith.addf %14, %17 : vector<16x128xf32>
    %cst_14 = arith.constant 0.000000e+00 : f32
    %19 = vector.broadcast %cst_14 : f32 to vector<16x128xf32>
    %20 = arith.maximumf %18, %19 : vector<16x128xf32>
    %21 = arith.truncf %20 : vector<16x128xf32> to vector<16x128xbf16>
    %c2 = arith.constant 2 : index
    %c0_15 = arith.constant 0 : index
    %c0_16 = arith.constant 0 : index
    %22 = vector.load %arg2[%c2, %c0_15, %c0_16] : memref<4x128x128xbf16, #tpu.memory_space<vmem>>, vector<1x128x128xbf16>
    %23 = vector.shape_cast %22 : vector<1x128x128xbf16> to vector<128x128xbf16>
    %cst_17 = arith.constant dense<0.000000e+00> : vector<16x128xf32>
    %24 = tpu.matmul %21, %23, %cst_17 {dimension_numbers = #tpu.dot_dimension_numbers<[1], [0], [0], [1], [0, 0, 1, 1], [], []>} : vector<16x128xbf16>, vector<128x128xbf16>, vector<16x128xf32> -> vector<16x128xf32>
    %c2_18 = arith.constant 2 : index
    %c0_19 = arith.constant 0 : index
    %c0_20 = arith.constant 0 : index
    %25 = vector.load %arg3[%c2_18, %c0_19, %c0_20] : memref<4x1x128xf32, #tpu.memory_space<vmem>>, vector<1x1x128xf32>
    %26 = vector.shape_cast %25 : vector<1x1x128xf32> to vector<1x128xf32>
    %27 = vector.broadcast %26 : vector<1x128xf32> to vector<16x128xf32>
    %28 = arith.addf %24, %27 : vector<16x128xf32>
    %cst_21 = arith.constant 0.000000e+00 : f32
    %29 = vector.broadcast %cst_21 : f32 to vector<16x128xf32>
    %30 = arith.maximumf %28, %29 : vector<16x128xf32>
    %31 = arith.truncf %30 : vector<16x128xf32> to vector<16x128xbf16>
    %c3 = arith.constant 3 : index
    %c0_22 = arith.constant 0 : index
    %c0_23 = arith.constant 0 : index
    %32 = vector.load %arg2[%c3, %c0_22, %c0_23] : memref<4x128x128xbf16, #tpu.memory_space<vmem>>, vector<1x128x128xbf16>
    %33 = vector.shape_cast %32 : vector<1x128x128xbf16> to vector<128x128xbf16>
    %cst_24 = arith.constant dense<0.000000e+00> : vector<16x128xf32>
    %34 = tpu.matmul %31, %33, %cst_24 {dimension_numbers = #tpu.dot_dimension_numbers<[1], [0], [0], [1], [0, 0, 1, 1], [], []>} : vector<16x128xbf16>, vector<128x128xbf16>, vector<16x128xf32> -> vector<16x128xf32>
    %c3_25 = arith.constant 3 : index
    %c0_26 = arith.constant 0 : index
    %c0_27 = arith.constant 0 : index
    %35 = vector.load %arg3[%c3_25, %c0_26, %c0_27] : memref<4x1x128xf32, #tpu.memory_space<vmem>>, vector<1x1x128xf32>
    %36 = vector.shape_cast %35 : vector<1x1x128xf32> to vector<1x128xf32>
    %37 = vector.broadcast %36 : vector<1x128xf32> to vector<16x128xf32>
    %38 = arith.addf %34, %37 : vector<16x128xf32>
    %cst_28 = arith.constant 0.000000e+00 : f32
    %39 = vector.broadcast %cst_28 : f32 to vector<16x128xf32>
    %40 = arith.maximumf %38, %39 : vector<16x128xf32>
    %c0_29 = arith.constant 0 : index
    %c0_30 = arith.constant 0 : index
    %41 = vector.load %arg4[%c0_29, %c0_30] : memref<16x128xf32, #tpu.memory_space<vmem>>, vector<16x128xf32>
    tpu.vector_store %arg4[%c0_29, %c0_30], %40 {strides = array<i32>} : memref<16x128xf32, #tpu.memory_space<vmem>>, vector<16x128xf32>,
    return
  }
  func.func @transform_0(%arg0: i32) -> (i32, i32) {
    %c0_i32 = arith.constant 0 : i32
    %c0_i32_0 = arith.constant 0 : i32
    return %arg0, %c0_i32 : i32, i32
  }
  func.func @transform_1(%arg0: i32) -> (i32, i32, i32) {
    %c0_i32 = arith.constant 0 : i32
    %c0_i32_0 = arith.constant 0 : i32
    %c0_i32_1 = arith.constant 0 : i32
    %c0_i32_2 = arith.constant 0 : i32
    return %c0_i32, %c0_i32_0, %c0_i32_1 : i32, i32, i32
  }
  func.func @transform_2(%arg0: i32) -> (i32, i32, i32) {
    %c0_i32 = arith.constant 0 : i32
    %c0_i32_0 = arith.constant 0 : i32
    %c0_i32_1 = arith.constant 0 : i32
    %c0_i32_2 = arith.constant 0 : i32
    return %c0_i32, %c0_i32_0, %c0_i32_1 : i32, i32, i32
  }
  func.func @transform_3(%arg0: i32) -> (i32, i32) {
    %c0_i32 = arith.constant 0 : i32
    %c0_i32_0 = arith.constant 0 : i32
    return %arg0, %c0_i32 : i32, i32
  }
}

module attributes {stable_mosaic.version = 11 : i64} {
  func.func @liresmlp_kernel(%arg0: i32, %arg1: memref<16x128xf32, #tpu.memory_space<vmem>>, %arg2: memref<4x128x128xbf16, #tpu.memory_space<vmem>>, %arg3: memref<4x1x128xf32, #tpu.memory_space<vmem>>, %arg4: memref<16x128xf32, #tpu.memory_space<vmem>>) attributes {dimension_semantics = [#tpu.dimension_semantics<parallel>], iteration_bounds = array<i64: 1>, scalar_prefetch = 0 : i64, scratch_operands = 0 : i64, tpu.core_type = #tpu.core_type<tc>, window_params = [{transform_indices = @transform_0, window_bounds = array<i64: 16, 128>}, {pipeline_mode = #tpu.pipeline_mode<synchronous>, transform_indices = @transform_1, window_bounds = array<i64: 4, 128, 128>}, {pipeline_mode = #tpu.pipeline_mode<synchronous>, transform_indices = @transform_2, window_bounds = array<i64: 4, 1, 128>}, {transform_indices = @transform_3, window_bounds = array<i64: 16, 128>}]} {
    %c0 = arith.constant 0 : index
    %c0_0 = arith.constant 0 : index
    %0 = vector.load %arg1[%c0, %c0_0] : memref<16x128xf32, #tpu.memory_space<vmem>>, vector<16x128xf32>
    %1 = arith.truncf %0 : vector<16x128xf32> to vector<16x128xbf16>
    %c0_1 = arith.constant 0 : index
    %c0_2 = arith.constant 0 : index
    %c0_3 = arith.constant 0 : index
    %2 = vector.load %arg2[%c0_1, %c0_2, %c0_3] : memref<4x128x128xbf16, #tpu.memory_space<vmem>>, vector<1x128x128xbf16>
    %3 = vector.shape_cast %2 : vector<1x128x128xbf16> to vector<128x128xbf16>
    %cst = arith.constant dense<0.000000e+00> : vector<16x128xf32>
    %4 = tpu.matmul %1, %3, %cst {dimension_numbers = #tpu.dot_dimension_numbers<[1], [0], [0], [1], [0, 0, 1, 1], [], []>} : vector<16x128xbf16>, vector<128x128xbf16>, vector<16x128xf32> -> vector<16x128xf32>
    %c0_4 = arith.constant 0 : index
    %c0_5 = arith.constant 0 : index
    %c0_6 = arith.constant 0 : index
    %5 = vector.load %arg3[%c0_4, %c0_5, %c0_6] : memref<4x1x128xf32, #tpu.memory_space<vmem>>, vector<1x1x128xf32>
    %6 = vector.shape_cast %5 : vector<1x1x128xf32> to vector<1x128xf32>
    %7 = vector.broadcast %6 : vector<1x128xf32> to vector<16x128xf32>
    %8 = arith.addf %4, %7 : vector<16x128xf32>
    %cst_7 = arith.constant 0.000000e+00 : f32
    %9 = vector.broadcast %cst_7 : f32 to vector<16x128xf32>
    %10 = arith.maximumf %8, %9 : vector<16x128xf32>
    %11 = arith.truncf %10 : vector<16x128xf32> to vector<16x128xbf16>
    %c1 = arith.constant 1 : index
    %c0_8 = arith.constant 0 : index
    %c0_9 = arith.constant 0 : index
    %12 = vector.load %arg2[%c1, %c0_8, %c0_9] : memref<4x128x128xbf16, #tpu.memory_space<vmem>>, vector<1x128x128xbf16>
    %13 = vector.shape_cast %12 : vector<1x128x128xbf16> to vector<128x128xbf16>
    %cst_10 = arith.constant dense<0.000000e+00> : vector<16x128xf32>
    %14 = tpu.matmul %11, %13, %cst_10 {dimension_numbers = #tpu.dot_dimension_numbers<[1], [0], [0], [1], [0, 0, 1, 1], [], []>} : vector<16x128xbf16>, vector<128x128xbf16>, vector<16x128xf32> -> vector<16x128xf32>
    %c1_11 = arith.constant 1 : index
    %c0_12 = arith.constant 0 : index
    %c0_13 = arith.constant 0 : index
    %15 = vector.load %arg3[%c1_11, %c0_12, %c0_13] : memref<4x1x128xf32, #tpu.memory_space<vmem>>, vector<1x1x128xf32>
    %16 = vector.shape_cast %15 : vector<1x1x128xf32> to vector<1x128xf32>
    %17 = vector.broadcast %16 : vector<1x128xf32> to vector<16x128xf32>
    %18 = arith.addf %14, %17 : vector<16x128xf32>
    %cst_14 = arith.constant 0.000000e+00 : f32
    %19 = vector.broadcast %cst_14 : f32 to vector<16x128xf32>
    %20 = arith.maximumf %18, %19 : vector<16x128xf32>
    %21 = arith.truncf %20 : vector<16x128xf32> to vector<16x128xbf16>
    %c2 = arith.constant 2 : index
    %c0_15 = arith.constant 0 : index
    %c0_16 = arith.constant 0 : index
    %22 = vector.load %arg2[%c2, %c0_15, %c0_16] : memref<4x128x128xbf16, #tpu.memory_space<vmem>>, vector<1x128x128xbf16>
    %23 = vector.shape_cast %22 : vector<1x128x128xbf16> to vector<128x128xbf16>
    %cst_17 = arith.constant dense<0.000000e+00> : vector<16x128xf32>
    %24 = tpu.matmul %21, %23, %cst_17 {dimension_numbers = #tpu.dot_dimension_numbers<[1], [0], [0], [1], [0, 0, 1, 1], [], []>} : vector<16x128xbf16>, vector<128x128xbf16>, vector<16x128xf32> -> vector<16x128xf32>
    %c2_18 = arith.constant 2 : index
    %c0_19 = arith.constant 0 : index
    %c0_20 = arith.constant 0 : index
    %25 = vector.load %arg3[%c2_18, %c0_19, %c0_20] : memref<4x1x128xf32, #tpu.memory_space<vmem>>, vector<1x1x128xf32>
    %26 = vector.shape_cast %25 : vector<1x1x128xf32> to vector<1x128xf32>
    %27 = vector.broadcast %26 : vector<1x128xf32> to vector<16x128xf32>
    %28 = arith.addf %24, %27 : vector<16x128xf32>
    %cst_21 = arith.constant 0.000000e+00 : f32
    %29 = vector.broadcast %cst_21 : f32 to vector<16x128xf32>
    %30 = arith.maximumf %28, %29 : vector<16x128xf32>
    %31 = arith.truncf %30 : vector<16x128xf32> to vector<16x128xbf16>
    %c3 = arith.constant 3 : index
    %c0_22 = arith.constant 0 : index
    %c0_23 = arith.constant 0 : index
    %32 = vector.load %arg2[%c3, %c0_22, %c0_23] : memref<4x128x128xbf16, #tpu.memory_space<vmem>>, vector<1x128x128xbf16>
    %33 = vector.shape_cast %32 : vector<1x128x128xbf16> to vector<128x128xbf16>
    %cst_24 = arith.constant dense<0.000000e+00> : vector<16x128xf32>
    %34 = tpu.matmul %31, %33, %cst_24 {dimension_numbers = #tpu.dot_dimension_numbers<[1], [0], [0], [1], [0, 0, 1, 1], [], []>} : vector<16x128xbf16>, vector<128x128xbf16>, vector<16x128xf32> -> vector<16x128xf32>
    %c3_25 = arith.constant 3 : index
    %c0_26 = arith.constant 0 : index
    %c0_27 = arith.constant 0 : index
    %35 = vector.load %arg3[%c3_25, %c0_26, %c0_27] : memref<4x1x128xf32, #tpu.memory_space<vmem>>, vector<1x1x128xf32>
    %36 = vector.shape_cast %35 : vector<1x1x128xf32> to vector<1x128xf32>
    %37 = vector.broadcast %36 : vector<1x128xf32> to vector<16x128xf32>
    %38 = arith.addf %34, %37 : vector<16x128xf32>
    %cst_28 = arith.constant 0.000000e+00 : f32
    %39 = vector.broadcast %cst_28 : f32 to vector<16x128xf32>
    %40 = arith.maximumf %38, %39 : vector<16x128xf32>
    %c0_29 = arith.constant 0 : index
    %c0_30 = arith.constant 0 : index
    %41 = vector.load %arg4[%c0_29, %c0_30] : memref<16x128xf32, #tpu.memory_space<vmem>>, vector<16x128xf32>
    tpu.vector_store %arg4[%c0_29, %c0_30], %40 {strides = array<i32>} : memref<16x128xf32, #tpu.memory_space<vmem>>, vector<16x128xf32>,
    return
  }
  func.func @transform_0(%arg0: i32) -> (i32, i32) {
    %c0_i32 = arith.constant 0 : i32
    %c0_i32_0 = arith.constant 0 : i32
    return %arg0, %c0_i32 : i32, i32
  }
  func.func @transform_1(%arg0: i32) -> (i32, i32, i32) {
    %c0_i32 = arith.constant 0 : i32
    %c0_i32_0 = arith.constant 0 : i32
    %c0_i32_1 = arith.constant 0 : i32
    %c0_i32_2 = arith.constant 0 : i32
    return %c0_i32, %c0_i32_0, %c0_i32_1 : i32, i32, i32
  }
  func.func @transform_2(%arg0: i32) -> (i32, i32, i32) {
    %c0_i32 = arith.constant 0 : i32
    %c0_i32_0 = arith.constant 0 : i32
    %c0_i32_1 = arith.constant 0 : i32
    %c0_i32_2 = arith.constant 0 : i32
    return %c0_i32, %c0_i32_0, %c0_i32_1 : i32, i32, i32
  }
  func.func @transform_3(%arg0: i32) -> (i32, i32) {
    %c0_i32 = arith.constant 0 : i32
    %c0_i32_0 = arith.constant 0 : i32
    return %arg0, %c0_i32 : i32, i32
  }
}

</mosaic_0001>

<llo_original>
// kernel: tpu_custom_call.1
$region0: #{tpu_custom_call.1}
  #allocation0 [shape = 'u32[]', space=smem, size = 0x4, offset = 0x4, fixed_abs, tag = 'smem constant byte address 0x4 - core index']
  #allocation1 [shape = 'u32[144,128]{1,0:T(1,128)}', space=vmem, size = 0x12000, scoped, tag = 'internal scratch']
  %s0 = inlined_call_operand.hbm [shape: f32[16,128], index: 0, kind: input, shape index: {}]
  %s1 = inlined_call_operand.hbm [shape: bf16[4,128,128], index: 1, kind: input, shape index: {}]
  %s2 = inlined_call_operand.hbm [shape: f32[4,1,128], index: 2, kind: input, shape index: {}]
  %s3 = inlined_call_operand.hbm [shape: f32[16,128], index: 3, kind: output, shape index: {}]
  %s4 = sld [smem:[#allocation0]]
  $region34: #{tpu_custom_call.1} parent=0
    _
  %s6 = ssub.s32 1, %s4
  %s7 = scalar_select 0, %s6, %s4
  $region1: #{tpu_custom_call.1} parent=0
    #allocation2 [shape = 'u8[8192]{0}', space=vmem, size = 0x2000, scoped, tag = 'input window, operand 0, single buffered']
    #allocation3 [shape = 's32[1]{0}', space=sflag, size = 0x4, scoped, tag = 'scoped memory for tpu_custom_call.1']
    #allocation4 [shape = 's32[1]{0}', space=sflag, size = 0x4, scoped, tag = 'scoped memory for tpu_custom_call.1']
    #allocation5 [shape = 'u8[131072]{0}', space=vmem, size = 0x20000, scoped, tag = 'input window, operand 1, single buffered']
    #allocation6 [shape = 's32[1]{0}', space=sflag, size = 0x4, scoped, tag = 'scoped memory for tpu_custom_call.1']
    #allocation7 [shape = 'u8[2048]{0}', space=vmem, size = 0x800, scoped, tag = 'input window, operand 2, single buffered']
    #allocation8 [shape = 'u8[8192]{0}', space=vmem, size = 0x2000, scoped, tag = 'output window, operand 0, single buffered']
    %8 = vsyncpa [#allocation3], 0
    %9 = vsyncpa [#allocation6], 0
    %10 = vsyncpa [#allocation4], 0
    // Predicated region
    $region2: #{tpu_custom_call.1} parent=1 // pred_check
      _
    $region3: #{tpu_custom_call.1} parent=1 // pred_check_branch
      %12 = sbr.rel (0) target = $region5
    $region4: #{tpu_custom_call.1} parent=1 // pred_region
      %s14 = ssub.s32 256, 256
      %15 = vsyncadd [#allocation3], %s14
      %s16 = sshll.u32 [#allocation2], 4
      %s17 = int_to_ptr.vmem [resolvable:$true] %s16
      %22 = dma.hbm_to_vmem [thread:$0]  %s0, 256, %s17, [#allocation3], 128, 128, 8
    $region5: #{tpu_custom_call.1} parent=1 // pred_fallthru
      _
    // Predicated region
    $region6: #{tpu_custom_call.1} parent=1 // pred_check
      _
    $region7: #{tpu_custom_call.1} parent=1 // pred_check_branch
      %24 = sbr.rel (0) target = $region9
    $region8: #{tpu_custom_call.1} parent=1 // pred_region
      %s26 = ssub.s32 4096, 4096
      %27 = vsyncadd [#allocation6], %s26
      %s28 = sshll.u32 [#allocation5], 4
      %s29 = int_to_ptr.vmem [resolvable:$true] %s28
      %34 = dma.hbm_to_vmem [thread:$0]  %s1, 4096, %s29, [#allocation6], 64, 64, 4
    $region9: #{tpu_custom_call.1} parent=1 // pred_fallthru
      _
    // Predicated region
    $region10: #{tpu_custom_call.1} parent=1 // pred_check
      _
    $region11: #{tpu_custom_call.1} parent=1 // pred_check_branch
      %36 = sbr.rel (0) target = $region13
    $region12: #{tpu_custom_call.1} parent=1 // pred_region
      %s38 = ssub.s32 64, 64
      %39 = vsyncadd [#allocation6], %s38
      %s40 = sshll.u32 [#allocation7], 4
      %s41 = int_to_ptr.vmem [resolvable:$true] %s40
      %46 = dma.hbm_to_vmem [thread:$0]  %s2, 64, %s41, [#allocation6], 16, 16, 1
    $region13: #{tpu_custom_call.1} parent=1 // pred_fallthru
      _
    // Predicated region
    $region14: #{tpu_custom_call.1} parent=1 // pred_check
      _
    $region15: #{tpu_custom_call.1} parent=1 // pred_check_branch
      %48 = sbr.rel (0) target = $region17
    $region16: #{tpu_custom_call.1} parent=1 // pred_region
      %49 = dma.done [#allocation3], 256
    $region17: #{tpu_custom_call.1} parent=1 // pred_fallthru
      _
    // Predicated region
    $region18: #{tpu_custom_call.1} parent=1 // pred_check
      _
    $region19: #{tpu_custom_call.1} parent=1 // pred_check_branch
      %51 = sbr.rel (0) target = $region21
    $region20: #{tpu_custom_call.1} parent=1 // pred_region
      %52 = dma.done [#allocation6], 4096
    $region21: #{tpu_custom_call.1} parent=1 // pred_fallthru
      _
    // Predicated region
    $region22: #{tpu_custom_call.1} parent=1 // pred_check
      _
    $region23: #{tpu_custom_call.1} parent=1 // pred_check_branch
      %54 = sbr.rel (0) target = $region25
    $region24: #{tpu_custom_call.1} parent=1 // pred_region
      %55 = dma.done [#allocation6], 64
    $region25: #{tpu_custom_call.1} parent=1 // pred_fallthru
      _
    %v57 = vld [vmem:[#allocation2] sm:$0xff]
    %v58 = vld [vmem:[#allocation2 + $0x8] sm:$0xff]
    %v59 = vpack.c.bf16 %v58, %v57
    %v60 = vld [vmem:[#allocation5] sm:$0xf]
    %v61 = vld [vmem:[#allocation5 + $0x4] sm:$0xf]
    %v62 = vld [vmem:[#allocation5 + $0x8] sm:$0xf]
    %v63 = vld [vmem:[#allocation5 + $0xc] sm:$0xf]
    %v64 = vld [vmem:[#allocation5 + $0x10] sm:$0xf]
    %v65 = vld [vmem:[#allocation5 + $0x14] sm:$0xf]
    %v66 = vld [vmem:[#allocation5 + $0x18] sm:$0xf]
    %v67 = vld [vmem:[#allocation5 + $0x1c] sm:$0xf]
    %v68 = vld [vmem:[#allocation5 + $0x20] sm:$0xf]
    %v69 = vld [vmem:[#allocation5 + $0x24] sm:$0xf]
    %v70 = vld [vmem:[#allocation5 + $0x28] sm:$0xf]
    %v71 = vld [vmem:[#allocation5 + $0x2c] sm:$0xf]
    %v72 = vld [vmem:[#allocation5 + $0x30] sm:$0xf]
    %v73 = vld [vmem:[#allocation5 + $0x34] sm:$0xf]
    %v74 = vld [vmem:[#allocation5 + $0x38] sm:$0xf]
    %v75 = vld [vmem:[#allocation5 + $0x3c] sm:$0xf]
    %v76 = vld [vmem:[#allocation7] sm:$0x1]
    %v78 = vlaneseq
    %v79 = vshrl.u32 %v78, 7
    %v80 = vsub.s32 0, %v79
    %v81 = vrot.slane %v76, %v80
    %v99 = vunpack.c.l.b16 %v60
    %v100 = vunpack.c.l.b16 %v61
    %v101 = vunpack.c.l.b16 %v62
    %v102 = vunpack.c.l.b16 %v63
    %v103 = vunpack.c.l.b16 %v64
    %v104 = vunpack.c.l.b16 %v65
    %v105 = vunpack.c.l.b16 %v66
    %v106 = vunpack.c.l.b16 %v67
    %v107 = vunpack.c.l.b16 %v68
    %v108 = vunpack.c.l.b16 %v69
    %v109 = vunpack.c.l.b16 %v70
    %v110 = vunpack.c.l.b16 %v71
    %v111 = vunpack.c.l.b16 %v72
    %v112 = vunpack.c.l.b16 %v73
    %v113 = vunpack.c.l.b16 %v74
    %v114 = vunpack.c.l.b16 %v75
    %v115 = vpack.c.b16 %v100, %v99
    %v116 = vpack.c.b16 %v102, %v101
    %v117 = vpack.c.b16 %v104, %v103
    %v118 = vpack.c.b16 %v106, %v105
    %v119 = vpack.c.b16 %v108, %v107
    %v120 = vpack.c.b16 %v110, %v109
    %v121 = vpack.c.b16 %v112, %v111
    %v122 = vpack.c.b16 %v114, %v113
    %131 = vmatprep.subr.bf16.mxu0 0
    %132 = vmatpush1.bf16.msra.mxu0 %v122
    %133 = vmatprep.subr.bf16.mxu0 0
    %134 = vmatpush1.bf16.msra.mxu0 %v121
    %135 = vmatprep.subr.bf16.mxu0 0
    %136 = vmatpush1.bf16.msra.mxu0 %v120
    %137 = vmatprep.subr.bf16.mxu0 0
    %138 = vmatpush1.bf16.msra.mxu0 %v119
    %139 = vmatprep.subr.bf16.mxu0 0
    %140 = vmatpush1.bf16.msra.mxu0 %v118
    %141 = vmatprep.subr.bf16.mxu0 0
    %142 = vmatpush1.bf16.msra.mxu0 %v117
    %143 = vmatprep.subr.bf16.mxu0 0
    %144 = vmatpush1.bf16.msra.mxu0 %v116
    %145 = vmatprep.subr.bf16.mxu0 0
    %146 = vmatpush1.bf16.msra.mxu0 %v115
    %147 = vmatprep.subr.bf16.mxu0 0
    %148 = vmatpush2.bf16.msra.mxu0 0
    %149 = vmatprep.subr.bf16.mxu0 0
    %150 = vmatpush2.bf16.msra.mxu0 0
    %151 = vmatprep.subr.bf16.mxu0 0
    %152 = vmatpush2.bf16.msra.mxu0 0
    %153 = vmatprep.subr.bf16.mxu0 0
    %154 = vmatpush2.bf16.msra.mxu0 0
    %155 = vmatprep.subr.bf16.mxu0 0
    %156 = vmatpush2.bf16.msra.mxu0 0
    %157 = vmatprep.subr.bf16.mxu0 0
    %158 = vmatpush2.bf16.msra.mxu0 0
    %159 = vmatprep.subr.bf16.mxu0 0
    %160 = vmatpush2.bf16.msra.mxu0 0
    %161 = vmatprep.subr.bf16.mxu0 0
    %162 = vmatpush2.bf16.msra.mxu0 0
    %163 = vmatprep.mubr.bf16.mxu0 0
    %164 = vmatmul.mubr.bf16.gmra.mxu0 %v59
    %v165 = vpop.f32.mrf.mxu0
    %v166 = vadd.f32 %v81, %v165
    %v167 = vpop.f32.mrf.mxu0
    %v168 = vpop.f32.mrf.mxu0
    %v169 = vadd.f32 %v81, %v168
    %v170 = vpop.f32.mrf.mxu0
    %171 = vdwg.mxu0
    %v172 = vmax.f32 %v166, 0.0
    %v173 = vmax.f32 %v169, 0.0
    %v174 = vpack.c.bf16 %v173, %v172
    %s175 = scalar_lea.vmem [#allocation5], 64
    %v176 = vld [vmem:[%s175] sm:$0xf]
    %v177 = vld [vmem:[%s175 + $0x4] sm:$0xf]
    %v178 = vld [vmem:[%s175 + $0x8] sm:$0xf]
    %v179 = vld [vmem:[%s175 + $0xc] sm:$0xf]
    %v180 = vld [vmem:[%s175 + $0x10] sm:$0xf]
    %v181 = vld [vmem:[%s175 + $0x14] sm:$0xf]
    %v182 = vld [vmem:[%s175 + $0x18] sm:$0xf]
    %v183 = vld [vmem:[%s175 + $0x1c] sm:$0xf]
    %v184 = vld [vmem:[%s175 + $0x20] sm:$0xf]
    %v185 = vld [vmem:[%s175 + $0x24] sm:$0xf]
    %v186 = vld [vmem:[%s175 + $0x28] sm:$0xf]
    %v187 = vld [vmem:[%s175 + $0x2c] sm:$0xf]
    %v188 = vld [vmem:[%s175 + $0x30] sm:$0xf]
    %v189 = vld [vmem:[%s175 + $0x34] sm:$0xf]
    %v190 = vld [vmem:[%s175 + $0x38] sm:$0xf]
    %v191 = vld [vmem:[%s175 + $0x3c] sm:$0xf]
    %s192 = scalar_lea.vmem [#allocation7], 1
    %v193 = vld [vmem:[%s192] sm:$0x1]
    %v195 = vlaneseq
    %v196 = vshrl.u32 %v195, 7
    %v197 = vsub.s32 0, %v196
    %v198 = vrot.slane %v193, %v197
    %v216 = vunpack.c.l.b16 %v176
    %v217 = vunpack.c.l.b16 %v177
    %v218 = vunpack.c.l.b16 %v178
    %v219 = vunpack.c.l.b16 %v179
    %v220 = vunpack.c.l.b16 %v180
    %v221 = vunpack.c.l.b16 %v181
    %v222 = vunpack.c.l.b16 %v182
    %v223 = vunpack.c.l.b16 %v183
    %v224 = vunpack.c.l.b16 %v184
    %v225 = vunpack.c.l.b16 %v185
    %v226 = vunpack.c.l.b16 %v186
    %v227 = vunpack.c.l.b16 %v187
    %v228 = vunpack.c.l.b16 %v188
    %v229 = vunpack.c.l.b16 %v189
    %v230 = vunpack.c.l.b16 %v190
    %v231 = vunpack.c.l.b16 %v191
    %v232 = vpack.c.b16 %v217, %v216
    %v233 = vpack.c.b16 %v219, %v218
    %v234 = vpack.c.b16 %v221, %v220
    %v235 = vpack.c.b16 %v223, %v222
    %v236 = vpack.c.b16 %v225, %v224
    %v237 = vpack.c.b16 %v227, %v226
    %v238 = vpack.c.b16 %v229, %v228
    %v239 = vpack.c.b16 %v231, %v230
    %248 = vmatprep.subr.bf16.mxu0 0
    %249 = vmatpush1.bf16.msra.mxu0 %v239
    %250 = vmatprep.subr.bf16.mxu0 0
    %251 = vmatpush1.bf16.msra.mxu0 %v238
    %252 = vmatprep.subr.bf16.mxu0 0
    %253 = vmatpush1.bf16.msra.mxu0 %v237
    %254 = vmatprep.subr.bf16.mxu0 0
    %255 = vmatpush1.bf16.msra.mxu0 %v236
    %256 = vmatprep.subr.bf16.mxu0 0
    %257 = vmatpush1.bf16.msra.mxu0 %v235
    %258 = vmatprep.subr.bf16.mxu0 0
    %259 = vmatpush1.bf16.msra.mxu0 %v234
    %260 = vmatprep.subr.bf16.mxu0 0
    %261 = vmatpush1.bf16.msra.mxu0 %v233
    %262 = vmatprep.subr.bf16.mxu0 0
    %263 = vmatpush1.bf16.msra.mxu0 %v232
    %264 = vmatprep.subr.bf16.mxu0 0
    %265 = vmatpush2.bf16.msra.mxu0 0
    %266 = vmatprep.subr.bf16.mxu0 0
    %267 = vmatpush2.bf16.msra.mxu0 0
    %268 = vmatprep.subr.bf16.mxu0 0
    %269 = vmatpush2.bf16.msra.mxu0 0
    %270 = vmatprep.subr.bf16.mxu0 0
    %271 = vmatpush2.bf16.msra.mxu0 0
    %272 = vmatprep.subr.bf16.mxu0 0
    %273 = vmatpush2.bf16.msra.mxu0 0
    %274 = vmatprep.subr.bf16.mxu0 0
    %275 = vmatpush2.bf16.msra.mxu0 0
    %276 = vmatprep.subr.bf16.mxu0 0
    %277 = vmatpush2.bf16.msra.mxu0 0
    %278 = vmatprep.subr.bf16.mxu0 0
    %279 = vmatpush2.bf16.msra.mxu0 0
    %280 = vmatprep.mubr.bf16.mxu0 0
    %281 = vmatmul.mubr.bf16.gmra.mxu0 %v174
    %v282 = vpop.f32.mrf.mxu0
    %v283 = vadd.f32 %v198, %v282
    %v284 = vpop.f32.mrf.mxu0
    %v285 = vpop.f32.mrf.mxu0
    %v286 = vadd.f32 %v198, %v285
    %v287 = vpop.f32.mrf.mxu0
    %288 = vdwg.mxu0
    %v289 = vmax.f32 %v283, 0.0
    %v290 = vmax.f32 %v286, 0.0
    %v291 = vpack.c.bf16 %v290, %v289
    %s292 = scalar_lea.vmem [#allocation5], 128
    %v293 = vld [vmem:[%s292] sm:$0xf]
    %v294 = vld [vmem:[%s292 + $0x4] sm:$0xf]
    %v295 = vld [vmem:[%s292 + $0x8] sm:$0xf]
    %v296 = vld [vmem:[%s292 + $0xc] sm:$0xf]
    %v297 = vld [vmem:[%s292 + $0x10] sm:$0xf]
    %v298 = vld [vmem:[%s292 + $0x14] sm:$0xf]
    %v299 = vld [vmem:[%s292 + $0x18] sm:$0xf]
    %v300 = vld [vmem:[%s292 + $0x1c] sm:$0xf]
    %v301 = vld [vmem:[%s292 + $0x20] sm:$0xf]
    %v302 = vld [vmem:[%s292 + $0x24] sm:$0xf]
    %v303 = vld [vmem:[%s292 + $0x28] sm:$0xf]
    %v304 = vld [vmem:[%s292 + $0x2c] sm:$0xf]
    %v305 = vld [vmem:[%s292 + $0x30] sm:$0xf]
    %v306 = vld [vmem:[%s292 + $0x34] sm:$0xf]
    %v307 = vld [vmem:[%s292 + $0x38] sm:$0xf]
    %v308 = vld [vmem:[%s292 + $0x3c] sm:$0xf]
    %s309 = scalar_lea.vmem [#allocation7], 2
    %v310 = vld [vmem:[%s309] sm:$0x1]
    %v312 = vlaneseq
    %v313 = vshrl.u32 %v312, 7
    %v314 = vsub.s32 0, %v313
    %v315 = vrot.slane %v310, %v314
    %v333 = vunpack.c.l.b16 %v293
    %v334 = vunpack.c.l.b16 %v294
    %v335 = vunpack.c.l.b16 %v295
    %v336 = vunpack.c.l.b16 %v296
    %v337 = vunpack.c.l.b16 %v297
    %v338 = vunpack.c.l.b16 %v298
    %v339 = vunpack.c.l.b16 %v299
    %v340 = vunpack.c.l.b16 %v300
    %v341 = vunpack.c.l.b16 %v301
    %v342 = vunpack.c.l.b16 %v302
    %v343 = vunpack.c.l.b16 %v303
    %v344 = vunpack.c.l.b16 %v304
    %v345 = vunpack.c.l.b16 %v305
    %v346 = vunpack.c.l.b16 %v306
    %v347 = vunpack.c.l.b16 %v307
    %v348 = vunpack.c.l.b16 %v308
    %v349 = vpack.c.b16 %v334, %v333
    %v350 = vpack.c.b16 %v336, %v335
    %v351 = vpack.c.b16 %v338, %v337
    %v352 = vpack.c.b16 %v340, %v339
    %v353 = vpack.c.b16 %v342, %v341
    %v354 = vpack.c.b16 %v344, %v343
    %v355 = vpack.c.b16 %v346, %v345
    %v356 = vpack.c.b16 %v348, %v347
    %365 = vmatprep.subr.bf16.mxu0 0
    %366 = vmatpush1.bf16.msra.mxu0 %v356
    %367 = vmatprep.subr.bf16.mxu0 0
    %368 = vmatpush1.bf16.msra.mxu0 %v355
    %369 = vmatprep.subr.bf16.mxu0 0
    %370 = vmatpush1.bf16.msra.mxu0 %v354
    %371 = vmatprep.subr.bf16.mxu0 0
    %372 = vmatpush1.bf16.msra.mxu0 %v353
    %373 = vmatprep.subr.bf16.mxu0 0
    %374 = vmatpush1.bf16.msra.mxu0 %v352
    %375 = vmatprep.subr.bf16.mxu0 0
    %376 = vmatpush1.bf16.msra.mxu0 %v351
    %377 = vmatprep.subr.bf16.mxu0 0
    %378 = vmatpush1.bf16.msra.mxu0 %v350
    %379 = vmatprep.subr.bf16.mxu0 0
    %380 = vmatpush1.bf16.msra.mxu0 %v349
    %381 = vmatprep.subr.bf16.mxu0 0
    %382 = vmatpush2.bf16.msra.mxu0 0
    %383 = vmatprep.subr.bf16.mxu0 0
    %384 = vmatpush2.bf16.msra.mxu0 0
    %385 = vmatprep.subr.bf16.mxu0 0
    %386 = vmatpush2.bf16.msra.mxu0 0
    %387 = vmatprep.subr.bf16.mxu0 0
    %388 = vmatpush2.bf16.msra.mxu0 0
    %389 = vmatprep.subr.bf16.mxu0 0
    %390 = vmatpush2.bf16.msra.mxu0 0
    %391 = vmatprep.subr.bf16.mxu0 0
    %392 = vmatpush2.bf16.msra.mxu0 0
    %393 = vmatprep.subr.bf16.mxu0 0
    %394 = vmatpush2.bf16.msra.mxu0 0
    %395 = vmatprep.subr.bf16.mxu0 0
    %396 = vmatpush2.bf16.msra.mxu0 0
    %397 = vmatprep.mubr.bf16.mxu0 0
    %398 = vmatmul.mubr.bf16.gmra.mxu0 %v291
    %v399 = vpop.f32.mrf.mxu0
    %v400 = vadd.f32 %v315, %v399
    %v401 = vpop.f32.mrf.mxu0
    %v402 = vpop.f32.mrf.mxu0
    %v403 = vadd.f32 %v315, %v402
    %v404 = vpop.f32.mrf.mxu0
    %405 = vdwg.mxu0
    %v406 = vmax.f32 %v400, 0.0
    %v407 = vmax.f32 %v403, 0.0
    %v408 = vpack.c.bf16 %v407, %v406
    %s409 = scalar_lea.vmem [#allocation5], 192
    %v410 = vld [vmem:[%s409] sm:$0xf]
    %v411 = vld [vmem:[%s409 + $0x4] sm:$0xf]
    %v412 = vld [vmem:[%s409 + $0x8] sm:$0xf]
    %v413 = vld [vmem:[%s409 + $0xc] sm:$0xf]
    %v414 = vld [vmem:[%s409 + $0x10] sm:$0xf]
    %v415 = vld [vmem:[%s409 + $0x14] sm:$0xf]
    %v416 = vld [vmem:[%s409 + $0x18] sm:$0xf]
    %v417 = vld [vmem:[%s409 + $0x1c] sm:$0xf]
    %v418 = vld [vmem:[%s409 + $0x20] sm:$0xf]
    %v419 = vld [vmem:[%s409 + $0x24] sm:$0xf]
    %v420 = vld [vmem:[%s409 + $0x28] sm:$0xf]
    %v421 = vld [vmem:[%s409 + $0x2c] sm:$0xf]
    %v422 = vld [vmem:[%s409 + $0x30] sm:$0xf]
    %v423 = vld [vmem:[%s409 + $0x34] sm:$0xf]
    %v424 = vld [vmem:[%s409 + $0x38] sm:$0xf]
    %v425 = vld [vmem:[%s409 + $0x3c] sm:$0xf]
    %s426 = scalar_lea.vmem [#allocation7], 3
    %v427 = vld [vmem:[%s426] sm:$0x1]
    %v429 = vlaneseq
    %v430 = vshrl.u32 %v429, 7
    %v431 = vsub.s32 0, %v430
    %v432 = vrot.slane %v427, %v431
    %v450 = vunpack.c.l.b16 %v410
    %v451 = vunpack.c.l.b16 %v411
    %v452 = vunpack.c.l.b16 %v412
    %v453 = vunpack.c.l.b16 %v413
    %v454 = vunpack.c.l.b16 %v414
    %v455 = vunpack.c.l.b16 %v415
    %v456 = vunpack.c.l.b16 %v416
    %v457 = vunpack.c.l.b16 %v417
    %v458 = vunpack.c.l.b16 %v418
    %v459 = vunpack.c.l.b16 %v419
    %v460 = vunpack.c.l.b16 %v420
    %v461 = vunpack.c.l.b16 %v421
    %v462 = vunpack.c.l.b16 %v422
    %v463 = vunpack.c.l.b16 %v423
    %v464 = vunpack.c.l.b16 %v424
    %v465 = vunpack.c.l.b16 %v425
    %v466 = vpack.c.b16 %v451, %v450
    %v467 = vpack.c.b16 %v453, %v452
    %v468 = vpack.c.b16 %v455, %v454
    %v469 = vpack.c.b16 %v457, %v456
    %v470 = vpack.c.b16 %v459, %v458
    %v471 = vpack.c.b16 %v461, %v460
    %v472 = vpack.c.b16 %v463, %v462
    %v473 = vpack.c.b16 %v465, %v464
    %482 = vmatprep.subr.bf16.mxu0 0
    %483 = vmatpush1.bf16.msra.mxu0 %v473
    %484 = vmatprep.subr.bf16.mxu0 0
    %485 = vmatpush1.bf16.msra.mxu0 %v472
    %486 = vmatprep.subr.bf16.mxu0 0
    %487 = vmatpush1.bf16.msra.mxu0 %v471
    %488 = vmatprep.subr.bf16.mxu0 0
    %489 = vmatpush1.bf16.msra.mxu0 %v470
    %490 = vmatprep.subr.bf16.mxu0 0
    %491 = vmatpush1.bf16.msra.mxu0 %v469
    %492 = vmatprep.subr.bf16.mxu0 0
    %493 = vmatpush1.bf16.msra.mxu0 %v468
    %494 = vmatprep.subr.bf16.mxu0 0
    %495 = vmatpush1.bf16.msra.mxu0 %v467
    %496 = vmatprep.subr.bf16.mxu0 0
    %497 = vmatpush1.bf16.msra.mxu0 %v466
    %498 = vmatprep.subr.bf16.mxu0 0
    %499 = vmatpush2.bf16.msra.mxu0 0
    %500 = vmatprep.subr.bf16.mxu0 0
    %501 = vmatpush2.bf16.msra.mxu0 0
    %502 = vmatprep.subr.bf16.mxu0 0
    %503 = vmatpush2.bf16.msra.mxu0 0
    %504 = vmatprep.subr.bf16.mxu0 0
    %505 = vmatpush2.bf16.msra.mxu0 0
    %506 = vmatprep.subr.bf16.mxu0 0
    %507 = vmatpush2.bf16.msra.mxu0 0
    %508 = vmatprep.subr.bf16.mxu0 0
    %509 = vmatpush2.bf16.msra.mxu0 0
    %510 = vmatprep.subr.bf16.mxu0 0
    %511 = vmatpush2.bf16.msra.mxu0 0
    %512 = vmatprep.subr.bf16.mxu0 0
    %513 = vmatpush2.bf16.msra.mxu0 0
    %514 = vmatprep.mubr.bf16.mxu0 0
    %515 = vmatmul.mubr.bf16.gmra.mxu0 %v408
    %v516 = vpop.f32.mrf.mxu0
    %v517 = vadd.f32 %v432, %v516
    %v518 = vpop.f32.mrf.mxu0
    %v519 = vpop.f32.mrf.mxu0
    %v520 = vadd.f32 %v432, %v519
    %v521 = vpop.f32.mrf.mxu0
    %522 = vdwg.mxu0
    %v523 = vmax.f32 %v517, 0.0
    %v524 = vmax.f32 %v520, 0.0
    %525 = vst [vmem:[#allocation8] sm:$0xff] %v523
    %526 = vst [vmem:[#allocation8 + $0x8] sm:$0xff] %v524
    // Predicated region
    $region26: #{tpu_custom_call.1} parent=1 // pred_check
      _
    $region27: #{tpu_custom_call.1} parent=1 // pred_check_branch
      %528 = sbr.rel (0) target = $region29
    $region28: #{tpu_custom_call.1} parent=1 // pred_region
      %s530 = ssub.s32 256, 256
      %531 = vsyncadd [#allocation4], %s530
      %s532 = sshll.u32 [#allocation8], 4
      %s533 = int_to_ptr.vmem [resolvable:$true] %s532
      %538 = dma.vmem_to_hbm [thread:$0]  %s533, 256, %s3, [#allocation4], 128, 128, 8
    $region29: #{tpu_custom_call.1} parent=1 // pred_fallthru
      _
    // Predicated region
    $region30: #{tpu_custom_call.1} parent=1 // pred_check
      _
    $region31: #{tpu_custom_call.1} parent=1 // pred_check_branch
      %540 = sbr.rel (0) target = $region33
    $region32: #{tpu_custom_call.1} parent=1 // pred_region
      %541 = dma.done [#allocation4], 256
    $region33: #{tpu_custom_call.1} parent=1 // pred_fallthru
      _
    %542 = vsyncpa [#allocation3], 1
    %543 = vsyncpa [#allocation6], 1
    %544 = vsyncpa [#allocation4], 1

// kernel: tpu_custom_call.1
$region0: #{tpu_custom_call.1}
  #allocation0 [shape = 'u32[]', space=smem, size = 0x4, offset = 0x4, fixed_abs, tag = 'smem constant byte address 0x4 - core index']
  #allocation1 [shape = 'u32[144,128]{1,0:T(1,128)}', space=vmem, size = 0x12000, scoped, tag = 'internal scratch']
  %s0 = inlined_call_operand.hbm [shape: f32[16,128], index: 0, kind: input, shape index: {}]
  %s1 = inlined_call_operand.hbm [shape: bf16[4,128,128], index: 1, kind: input, shape index: {}]
  %s2 = inlined_call_operand.hbm [shape: f32[4,1,128], index: 2, kind: input, shape index: {}]
  %s3 = inlined_call_operand.hbm [shape: f32[16,128], index: 3, kind: output, shape index: {}]
  %s4 = sld [smem:[#allocation0]]
  $region34: #{tpu_custom_call.1} parent=0
    _
  %s6 = ssub.s32 1, %s4
  %s7 = scalar_select 0, %s6, %s4
  $region1: #{tpu_custom_call.1} parent=0
    #allocation2 [shape = 'u8[8192]{0}', space=vmem, size = 0x2000, scoped, tag = 'input window, operand 0, single buffered']
    #allocation3 [shape = 's32[1]{0}', space=sflag, size = 0x4, scoped, tag = 'scoped memory for tpu_custom_call.1']
    #allocation4 [shape = 's32[1]{0}', space=sflag, size = 0x4, scoped, tag = 'scoped memory for tpu_custom_call.1']
    #allocation5 [shape = 'u8[131072]{0}', space=vmem, size = 0x20000, scoped, tag = 'input window, operand 1, single buffered']
    #allocation6 [shape = 's32[1]{0}', space=sflag, size = 0x4, scoped, tag = 'scoped memory for tpu_custom_call.1']
    #allocation7 [shape = 'u8[2048]{0}', space=vmem, size = 0x800, scoped, tag = 'input window, operand 2, single buffered']
    #allocation8 [shape = 'u8[8192]{0}', space=vmem, size = 0x2000, scoped, tag = 'output window, operand 0, single buffered']
    %8 = vsyncpa [#allocation3], 0
    %9 = vsyncpa [#allocation6], 0
    %10 = vsyncpa [#allocation4], 0
    // Predicated region
    $region2: #{tpu_custom_call.1} parent=1 // pred_check
      _
    $region3: #{tpu_custom_call.1} parent=1 // pred_check_branch
      %12 = sbr.rel (0) target = $region5
    $region4: #{tpu_custom_call.1} parent=1 // pred_region
      %s14 = ssub.s32 256, 256
      %15 = vsyncadd [#allocation3], %s14
      %s16 = sshll.u32 [#allocation2], 4
      %s17 = int_to_ptr.vmem [resolvable:$true] %s16
      %22 = dma.hbm_to_vmem [thread:$0]  %s0, 256, %s17, [#allocation3], 128, 128, 8
    $region5: #{tpu_custom_call.1} parent=1 // pred_fallthru
      _
    // Predicated region
    $region6: #{tpu_custom_call.1} parent=1 // pred_check
      _
    $region7: #{tpu_custom_call.1} parent=1 // pred_check_branch
      %24 = sbr.rel (0) target = $region9
    $region8: #{tpu_custom_call.1} parent=1 // pred_region
      %s26 = ssub.s32 4096, 4096
      %27 = vsyncadd [#allocation6], %s26
      %s28 = sshll.u32 [#allocation5], 4
      %s29 = int_to_ptr.vmem [resolvable:$true] %s28
      %34 = dma.hbm_to_vmem [thread:$0]  %s1, 4096, %s29, [#allocation6], 64, 64, 4
    $region9: #{tpu_custom_call.1} parent=1 // pred_fallthru
      _
    // Predicated region
    $region10: #{tpu_custom_call.1} parent=1 // pred_check
      _
    $region11: #{tpu_custom_call.1} parent=1 // pred_check_branch
      %36 = sbr.rel (0) target = $region13
    $region12: #{tpu_custom_call.1} parent=1 // pred_region
      %s38 = ssub.s32 64, 64
      %39 = vsyncadd [#allocation6], %s38
      %s40 = sshll.u32 [#allocation7], 4
      %s41 = int_to_ptr.vmem [resolvable:$true] %s40
      %46 = dma.hbm_to_vmem [thread:$0]  %s2, 64, %s41, [#allocation6], 16, 16, 1
    $region13: #{tpu_custom_call.1} parent=1 // pred_fallthru
      _
    // Predicated region
    $region14: #{tpu_custom_call.1} parent=1 // pred_check
      _
    $region15: #{tpu_custom_call.1} parent=1 // pred_check_branch
      %48 = sbr.rel (0) target = $region17
    $region16: #{tpu_custom_call.1} parent=1 // pred_region
      %49 = dma.done [#allocation3], 256
    $region17: #{tpu_custom_call.1} parent=1 // pred_fallthru
      _
    // Predicated region
    $region18: #{tpu_custom_call.1} parent=1 // pred_check
      _
    $region19: #{tpu_custom_call.1} parent=1 // pred_check_branch
      %51 = sbr.rel (0) target = $region21
    $region20: #{tpu_custom_call.1} parent=1 // pred_region
      %52 = dma.done [#allocation6], 4096
    $region21: #{tpu_custom_call.1} parent=1 // pred_fallthru
      _
    // Predicated region
    $region22: #{tpu_custom_call.1} parent=1 // pred_check
      _
    $region23: #{tpu_custom_call.1} parent=1 // pred_check_branch
      %54 = sbr.rel (0) target = $region25
    $region24: #{tpu_custom_call.1} parent=1 // pred_region
      %55 = dma.done [#allocation6], 64
    $region25: #{tpu_custom_call.1} parent=1 // pred_fallthru
      _
    %v57 = vld [vmem:[#allocation2] sm:$0xff]
    %v58 = vld [vmem:[#allocation2 + $0x8] sm:$0xff]
    %v59 = vpack.c.bf16 %v58, %v57
    %v60 = vld [vmem:[#allocation5] sm:$0xf]
    %v61 = vld [vmem:[#allocation5 + $0x4] sm:$0xf]
    %v62 = vld [vmem:[#allocation5 + $0x8] sm:$0xf]
    %v63 = vld [vmem:[#allocation5 + $0xc] sm:$0xf]
    %v64 = vld [vmem:[#allocation5 + $0x10] sm:$0xf]
    %v65 = vld [vmem:[#allocation5 + $0x14] sm:$0xf]
    %v66 = vld [vmem:[#allocation5 + $0x18] sm:$0xf]
    %v67 = vld [vmem:[#allocation5 + $0x1c] sm:$0xf]
    %v68 = vld [vmem:[#allocation5 + $0x20] sm:$0xf]
    %v69 = vld [vmem:[#allocation5 + $0x24] sm:$0xf]
    %v70 = vld [vmem:[#allocation5 + $0x28] sm:$0xf]
    %v71 = vld [vmem:[#allocation5 + $0x2c] sm:$0xf]
    %v72 = vld [vmem:[#allocation5 + $0x30] sm:$0xf]
    %v73 = vld [vmem:[#allocation5 + $0x34] sm:$0xf]
    %v74 = vld [vmem:[#allocation5 + $0x38] sm:$0xf]
    %v75 = vld [vmem:[#allocation5 + $0x3c] sm:$0xf]
    %v76 = vld [vmem:[#allocation7] sm:$0x1]
    %v78 = vlaneseq
    %v79 = vshrl.u32 %v78, 7
    %v80 = vsub.s32 0, %v79
    %v81 = vrot.slane %v76, %v80
    %v99 = vunpack.c.l.b16 %v60
    %v100 = vunpack.c.l.b16 %v61
    %v101 = vunpack.c.l.b16 %v62
    %v102 = vunpack.c.l.b16 %v63
    %v103 = vunpack.c.l.b16 %v64
    %v104 = vunpack.c.l.b16 %v65
    %v105 = vunpack.c.l.b16 %v66
    %v106 = vunpack.c.l.b16 %v67
    %v107 = vunpack.c.l.b16 %v68
    %v108 = vunpack.c.l.b16 %v69
    %v109 = vunpack.c.l.b16 %v70
    %v110 = vunpack.c.l.b16 %v71
    %v111 = vunpack.c.l.b16 %v72
    %v112 = vunpack.c.l.b16 %v73
    %v113 = vunpack.c.l.b16 %v74
    %v114 = vunpack.c.l.b16 %v75
    %v115 = vpack.c.b16 %v100, %v99
    %v116 = vpack.c.b16 %v102, %v101
    %v117 = vpack.c.b16 %v104, %v103
    %v118 = vpack.c.b16 %v106, %v105
    %v119 = vpack.c.b16 %v108, %v107
    %v120 = vpack.c.b16 %v110, %v109
    %v121 = vpack.c.b16 %v112, %v111
    %v122 = vpack.c.b16 %v114, %v113
    %131 = vmatprep.subr.bf16.mxu0 0
    %132 = vmatpush1.bf16.msra.mxu0 %v122
    %133 = vmatprep.subr.bf16.mxu0 0
    %134 = vmatpush1.bf16.msra.mxu0 %v121
    %135 = vmatprep.subr.bf16.mxu0 0
    %136 = vmatpush1.bf16.msra.mxu0 %v120
    %137 = vmatprep.subr.bf16.mxu0 0
    %138 = vmatpush1.bf16.msra.mxu0 %v119
    %139 = vmatprep.subr.bf16.mxu0 0
    %140 = vmatpush1.bf16.msra.mxu0 %v118
    %141 = vmatprep.subr.bf16.mxu0 0
    %142 = vmatpush1.bf16.msra.mxu0 %v117
    %143 = vmatprep.subr.bf16.mxu0 0
    %144 = vmatpush1.bf16.msra.mxu0 %v116
    %145 = vmatprep.subr.bf16.mxu0 0
    %146 = vmatpush1.bf16.msra.mxu0 %v115
    %147 = vmatprep.subr.bf16.mxu0 0
    %148 = vmatpush2.bf16.msra.mxu0 0
    %149 = vmatprep.subr.bf16.mxu0 0
    %150 = vmatpush2.bf16.msra.mxu0 0
    %151 = vmatprep.subr.bf16.mxu0 0
    %152 = vmatpush2.bf16.msra.mxu0 0
    %153 = vmatprep.subr.bf16.mxu0 0
    %154 = vmatpush2.bf16.msra.mxu0 0
    %155 = vmatprep.subr.bf16.mxu0 0
    %156 = vmatpush2.bf16.msra.mxu0 0
    %157 = vmatprep.subr.bf16.mxu0 0
    %158 = vmatpush2.bf16.msra.mxu0 0
    %159 = vmatprep.subr.bf16.mxu0 0
    %160 = vmatpush2.bf16.msra.mxu0 0
    %161 = vmatprep.subr.bf16.mxu0 0
    %162 = vmatpush2.bf16.msra.mxu0 0
    %163 = vmatprep.mubr.bf16.mxu0 0
    %164 = vmatmul.mubr.bf16.gmra.mxu0 %v59
    %v165 = vpop.f32.mrf.mxu0
    %v166 = vadd.f32 %v81, %v165
    %v167 = vpop.f32.mrf.mxu0
    %v168 = vpop.f32.mrf.mxu0
    %v169 = vadd.f32 %v81, %v168
    %v170 = vpop.f32.mrf.mxu0
    %171 = vdwg.mxu0
    %v172 = vmax.f32 %v166, 0.0
    %v173 = vmax.f32 %v169, 0.0
    %v174 = vpack.c.bf16 %v173, %v172
    %s175 = scalar_lea.vmem [#allocation5], 64
    %v176 = vld [vmem:[%s175] sm:$0xf]
    %v177 = vld [vmem:[%s175 + $0x4] sm:$0xf]
    %v178 = vld [vmem:[%s175 + $0x8] sm:$0xf]
    %v179 = vld [vmem:[%s175 + $0xc] sm:$0xf]
    %v180 = vld [vmem:[%s175 + $0x10] sm:$0xf]
    %v181 = vld [vmem:[%s175 + $0x14] sm:$0xf]
    %v182 = vld [vmem:[%s175 + $0x18] sm:$0xf]
    %v183 = vld [vmem:[%s175 + $0x1c] sm:$0xf]
    %v184 = vld [vmem:[%s175 + $0x20] sm:$0xf]
    %v185 = vld [vmem:[%s175 + $0x24] sm:$0xf]
    %v186 = vld [vmem:[%s175 + $0x28] sm:$0xf]
    %v187 = vld [vmem:[%s175 + $0x2c] sm:$0xf]
    %v188 = vld [vmem:[%s175 + $0x30] sm:$0xf]
    %v189 = vld [vmem:[%s175 + $0x34] sm:$0xf]
    %v190 = vld [vmem:[%s175 + $0x38] sm:$0xf]
    %v191 = vld [vmem:[%s175 + $0x3c] sm:$0xf]
    %s192 = scalar_lea.vmem [#allocation7], 1
    %v193 = vld [vmem:[%s192] sm:$0x1]
    %v195 = vlaneseq
    %v196 = vshrl.u32 %v195, 7
    %v197 = vsub.s32 0, %v196
    %v198 = vrot.slane %v193, %v197
    %v216 = vunpack.c.l.b16 %v176
    %v217 = vunpack.c.l.b16 %v177
    %v218 = vunpack.c.l.b16 %v178
    %v219 = vunpack.c.l.b16 %v179
    %v220 = vunpack.c.l.b16 %v180
    %v221 = vunpack.c.l.b16 %v181
    %v222 = vunpack.c.l.b16 %v182
    %v223 = vunpack.c.l.b16 %v183
    %v224 = vunpack.c.l.b16 %v184
    %v225 = vunpack.c.l.b16 %v185
    %v226 = vunpack.c.l.b16 %v186
    %v227 = vunpack.c.l.b16 %v187
    %v228 = vunpack.c.l.b16 %v188
    %v229 = vunpack.c.l.b16 %v189
    %v230 = vunpack.c.l.b16 %v190
    %v231 = vunpack.c.l.b16 %v191
    %v232 = vpack.c.b16 %v217, %v216
    %v233 = vpack.c.b16 %v219, %v218
    %v234 = vpack.c.b16 %v221, %v220
    %v235 = vpack.c.b16 %v223, %v222
    %v236 = vpack.c.b16 %v225, %v224
    %v237 = vpack.c.b16 %v227, %v226
    %v238 = vpack.c.b16 %v229, %v228
    %v239 = vpack.c.b16 %v231, %v230
    %248 = vmatprep.subr.bf16.mxu0 0
    %249 = vmatpush1.bf16.msra.mxu0 %v239
    %250 = vmatprep.subr.bf16.mxu0 0
    %251 = vmatpush1.bf16.msra.mxu0 %v238
    %252 = vmatprep.subr.bf16.mxu0 0
    %253 = vmatpush1.bf16.msra.mxu0 %v237
    %254 = vmatprep.subr.bf16.mxu0 0
    %255 = vmatpush1.bf16.msra.mxu0 %v236
    %256 = vmatprep.subr.bf16.mxu0 0
    %257 = vmatpush1.bf16.msra.mxu0 %v235
    %258 = vmatprep.subr.bf16.mxu0 0
    %259 = vmatpush1.bf16.msra.mxu0 %v234
    %260 = vmatprep.subr.bf16.mxu0 0
    %261 = vmatpush1.bf16.msra.mxu0 %v233
    %262 = vmatprep.subr.bf16.mxu0 0
    %263 = vmatpush1.bf16.msra.mxu0 %v232
    %264 = vmatprep.subr.bf16.mxu0 0
    %265 = vmatpush2.bf16.msra.mxu0 0
    %266 = vmatprep.subr.bf16.mxu0 0
    %267 = vmatpush2.bf16.msra.mxu0 0
    %268 = vmatprep.subr.bf16.mxu0 0
    %269 = vmatpush2.bf16.msra.mxu0 0
    %270 = vmatprep.subr.bf16.mxu0 0
    %271 = vmatpush2.bf16.msra.mxu0 0
    %272 = vmatprep.subr.bf16.mxu0 0
    %273 = vmatpush2.bf16.msra.mxu0 0
    %274 = vmatprep.subr.bf16.mxu0 0
    %275 = vmatpush2.bf16.msra.mxu0 0
    %276 = vmatprep.subr.bf16.mxu0 0
    %277 = vmatpush2.bf16.msra.mxu0 0
    %278 = vmatprep.subr.bf16.mxu0 0
    %279 = vmatpush2.bf16.msra.mxu0 0
    %280 = vmatprep.mubr.bf16.mxu0 0
    %281 = vmatmul.mubr.bf16.gmra.mxu0 %v174
    %v282 = vpop.f32.mrf.mxu0
    %v283 = vadd.f32 %v198, %v282
    %v284 = vpop.f32.mrf.mxu0
    %v285 = vpop.f32.mrf.mxu0
    %v286 = vadd.f32 %v198, %v285
    %v287 = vpop.f32.mrf.mxu0
    %288 = vdwg.mxu0
    %v289 = vmax.f32 %v283, 0.0
    %v290 = vmax.f32 %v286, 0.0
    %v291 = vpack.c.bf16 %v290, %v289
    %s292 = scalar_lea.vmem [#allocation5], 128
    %v293 = vld [vmem:[%s292] sm:$0xf]
    %v294 = vld [vmem:[%s292 + $0x4] sm:$0xf]
    %v295 = vld [vmem:[%s292 + $0x8] sm:$0xf]
    %v296 = vld [vmem:[%s292 + $0xc] sm:$0xf]
    %v297 = vld [vmem:[%s292 + $0x10] sm:$0xf]
    %v298 = vld [vmem:[%s292 + $0x14] sm:$0xf]
    %v299 = vld [vmem:[%s292 + $0x18] sm:$0xf]
    %v300 = vld [vmem:[%s292 + $0x1c] sm:$0xf]
    %v301 = vld [vmem:[%s292 + $0x20] sm:$0xf]
    %v302 = vld [vmem:[%s292 + $0x24] sm:$0xf]
    %v303 = vld [vmem:[%s292 + $0x28] sm:$0xf]
    %v304 = vld [vmem:[%s292 + $0x2c] sm:$0xf]
    %v305 = vld [vmem:[%s292 + $0x30] sm:$0xf]
    %v306 = vld [vmem:[%s292 + $0x34] sm:$0xf]
    %v307 = vld [vmem:[%s292 + $0x38] sm:$0xf]
    %v308 = vld [vmem:[%s292 + $0x3c] sm:$0xf]
    %s309 = scalar_lea.vmem [#allocation7], 2
    %v310 = vld [vmem:[%s309] sm:$0x1]
    %v312 = vlaneseq
    %v313 = vshrl.u32 %v312, 7
    %v314 = vsub.s32 0, %v313
    %v315 = vrot.slane %v310, %v314
    %v333 = vunpack.c.l.b16 %v293
    %v334 = vunpack.c.l.b16 %v294
    %v335 = vunpack.c.l.b16 %v295
    %v336 = vunpack.c.l.b16 %v296
    %v337 = vunpack.c.l.b16 %v297
    %v338 = vunpack.c.l.b16 %v298
    %v339 = vunpack.c.l.b16 %v299
    %v340 = vunpack.c.l.b16 %v300
    %v341 = vunpack.c.l.b16 %v301
    %v342 = vunpack.c.l.b16 %v302
    %v343 = vunpack.c.l.b16 %v303
    %v344 = vunpack.c.l.b16 %v304
    %v345 = vunpack.c.l.b16 %v305
    %v346 = vunpack.c.l.b16 %v306
    %v347 = vunpack.c.l.b16 %v307
    %v348 = vunpack.c.l.b16 %v308
    %v349 = vpack.c.b16 %v334, %v333
    %v350 = vpack.c.b16 %v336, %v335
    %v351 = vpack.c.b16 %v338, %v337
    %v352 = vpack.c.b16 %v340, %v339
    %v353 = vpack.c.b16 %v342, %v341
    %v354 = vpack.c.b16 %v344, %v343
    %v355 = vpack.c.b16 %v346, %v345
    %v356 = vpack.c.b16 %v348, %v347
    %365 = vmatprep.subr.bf16.mxu0 0
    %366 = vmatpush1.bf16.msra.mxu0 %v356
    %367 = vmatprep.subr.bf16.mxu0 0
    %368 = vmatpush1.bf16.msra.mxu0 %v355
    %369 = vmatprep.subr.bf16.mxu0 0
    %370 = vmatpush1.bf16.msra.mxu0 %v354
    %371 = vmatprep.subr.bf16.mxu0 0
    %372 = vmatpush1.bf16.msra.mxu0 %v353
    %373 = vmatprep.subr.bf16.mxu0 0
    %374 = vmatpush1.bf16.msra.mxu0 %v352
    %375 = vmatprep.subr.bf16.mxu0 0
    %376 = vmatpush1.bf16.msra.mxu0 %v351
    %377 = vmatprep.subr.bf16.mxu0 0
    %378 = vmatpush1.bf16.msra.mxu0 %v350
    %379 = vmatprep.subr.bf16.mxu0 0
    %380 = vmatpush1.bf16.msra.mxu0 %v349
    %381 = vmatprep.subr.bf16.mxu0 0
    %382 = vmatpush2.bf16.msra.mxu0 0
    %383 = vmatprep.subr.bf16.mxu0 0
    %384 = vmatpush2.bf16.msra.mxu0 0
    %385 = vmatprep.subr.bf16.mxu0 0
    %386 = vmatpush2.bf16.msra.mxu0 0
    %387 = vmatprep.subr.bf16.mxu0 0
    %388 = vmatpush2.bf16.msra.mxu0 0
    %389 = vmatprep.subr.bf16.mxu0 0
    %390 = vmatpush2.bf16.msra.mxu0 0
    %391 = vmatprep.subr.bf16.mxu0 0
    %392 = vmatpush2.bf16.msra.mxu0 0
    %393 = vmatprep.subr.bf16.mxu0 0
    %394 = vmatpush2.bf16.msra.mxu0 0
    %395 = vmatprep.subr.bf16.mxu0 0
    %396 = vmatpush2.bf16.msra.mxu0 0
    %397 = vmatprep.mubr.bf16.mxu0 0
    %398 = vmatmul.mubr.bf16.gmra.mxu0 %v291
    %v399 = vpop.f32.mrf.mxu0
    %v400 = vadd.f32 %v315, %v399
    %v401 = vpop.f32.mrf.mxu0
    %v402 = vpop.f32.mrf.mxu0
    %v403 = vadd.f32 %v315, %v402
    %v404 = vpop.f32.mrf.mxu0
    %405 = vdwg.mxu0
    %v406 = vmax.f32 %v400, 0.0
    %v407 = vmax.f32 %v403, 0.0
    %v408 = vpack.c.bf16 %v407, %v406
    %s409 = scalar_lea.vmem [#allocation5], 192
    %v410 = vld [vmem:[%s409] sm:$0xf]
    %v411 = vld [vmem:[%s409 + $0x4] sm:$0xf]
    %v412 = vld [vmem:[%s409 + $0x8] sm:$0xf]
    %v413 = vld [vmem:[%s409 + $0xc] sm:$0xf]
    %v414 = vld [vmem:[%s409 + $0x10] sm:$0xf]
    %v415 = vld [vmem:[%s409 + $0x14] sm:$0xf]
    %v416 = vld [vmem:[%s409 + $0x18] sm:$0xf]
    %v417 = vld [vmem:[%s409 + $0x1c] sm:$0xf]
    %v418 = vld [vmem:[%s409 + $0x20] sm:$0xf]
    %v419 = vld [vmem:[%s409 + $0x24] sm:$0xf]
    %v420 = vld [vmem:[%s409 + $0x28] sm:$0xf]
    %v421 = vld [vmem:[%s409 + $0x2c] sm:$0xf]
    %v422 = vld [vmem:[%s409 + $0x30] sm:$0xf]
    %v423 = vld [vmem:[%s409 + $0x34] sm:$0xf]
    %v424 = vld [vmem:[%s409 + $0x38] sm:$0xf]
    %v425 = vld [vmem:[%s409 + $0x3c] sm:$0xf]
    %s426 = scalar_lea.vmem [#allocation7], 3
    %v427 = vld [vmem:[%s426] sm:$0x1]
    %v429 = vlaneseq
    %v430 = vshrl.u32 %v429, 7
    %v431 = vsub.s32 0, %v430
    %v432 = vrot.slane %v427, %v431
    %v450 = vunpack.c.l.b16 %v410
    %v451 = vunpack.c.l.b16 %v411
    %v452 = vunpack.c.l.b16 %v412
    %v453 = vunpack.c.l.b16 %v413
    %v454 = vunpack.c.l.b16 %v414
    %v455 = vunpack.c.l.b16 %v415
    %v456 = vunpack.c.l.b16 %v416
    %v457 = vunpack.c.l.b16 %v417
    %v458 = vunpack.c.l.b16 %v418
    %v459 = vunpack.c.l.b16 %v419
    %v460 = vunpack.c.l.b16 %v420
    %v461 = vunpack.c.l.b16 %v421
    %v462 = vunpack.c.l.b16 %v422
    %v463 = vunpack.c.l.b16 %v423
    %v464 = vunpack.c.l.b16 %v424
    %v465 = vunpack.c.l.b16 %v425
    %v466 = vpack.c.b16 %v451, %v450
    %v467 = vpack.c.b16 %v453, %v452
    %v468 = vpack.c.b16 %v455, %v454
    %v469 = vpack.c.b16 %v457, %v456
    %v470 = vpack.c.b16 %v459, %v458
    %v471 = vpack.c.b16 %v461, %v460
    %v472 = vpack.c.b16 %v463, %v462
    %v473 = vpack.c.b16 %v465, %v464
    %482 = vmatprep.subr.bf16.mxu0 0
    %483 = vmatpush1.bf16.msra.mxu0 %v473
    %484 = vmatprep.subr.bf16.mxu0 0
    %485 = vmatpush1.bf16.msra.mxu0 %v472
    %486 = vmatprep.subr.bf16.mxu0 0
    %487 = vmatpush1.bf16.msra.mxu0 %v471
    %488 = vmatprep.subr.bf16.mxu0 0
    %489 = vmatpush1.bf16.msra.mxu0 %v470
    %490 = vmatprep.subr.bf16.mxu0 0
    %491 = vmatpush1.bf16.msra.mxu0 %v469
    %492 = vmatprep.subr.bf16.mxu0 0
    %493 = vmatpush1.bf16.msra.mxu0 %v468
    %494 = vmatprep.subr.bf16.mxu0 0
    %495 = vmatpush1.bf16.msra.mxu0 %v467
    %496 = vmatprep.subr.bf16.mxu0 0
    %497 = vmatpush1.bf16.msra.mxu0 %v466
    %498 = vmatprep.subr.bf16.mxu0 0
    %499 = vmatpush2.bf16.msra.mxu0 0
    %500 = vmatprep.subr.bf16.mxu0 0
    %501 = vmatpush2.bf16.msra.mxu0 0
    %502 = vmatprep.subr.bf16.mxu0 0
    %503 = vmatpush2.bf16.msra.mxu0 0
    %504 = vmatprep.subr.bf16.mxu0 0
    %505 = vmatpush2.bf16.msra.mxu0 0
    %506 = vmatprep.subr.bf16.mxu0 0
    %507 = vmatpush2.bf16.msra.mxu0 0
    %508 = vmatprep.subr.bf16.mxu0 0
    %509 = vmatpush2.bf16.msra.mxu0 0
    %510 = vmatprep.subr.bf16.mxu0 0
    %511 = vmatpush2.bf16.msra.mxu0 0
    %512 = vmatprep.subr.bf16.mxu0 0
    %513 = vmatpush2.bf16.msra.mxu0 0
    %514 = vmatprep.mubr.bf16.mxu0 0
    %515 = vmatmul.mubr.bf16.gmra.mxu0 %v408
    %v516 = vpop.f32.mrf.mxu0
    %v517 = vadd.f32 %v432, %v516
    %v518 = vpop.f32.mrf.mxu0
    %v519 = vpop.f32.mrf.mxu0
    %v520 = vadd.f32 %v432, %v519
    %v521 = vpop.f32.mrf.mxu0
    %522 = vdwg.mxu0
    %v523 = vmax.f32 %v517, 0.0
    %v524 = vmax.f32 %v520, 0.0
    %525 = vst [vmem:[#allocation8] sm:$0xff] %v523
    %526 = vst [vmem:[#allocation8 + $0x8] sm:$0xff] %v524
    // Predicated region
    $region26: #{tpu_custom_call.1} parent=1 // pred_check
      _
    $region27: #{tpu_custom_call.1} parent=1 // pred_check_branch
      %528 = sbr.rel (0) target = $region29
    $region28: #{tpu_custom_call.1} parent=1 // pred_region
      %s530 = ssub.s32 256, 256
      %531 = vsyncadd [#allocation4], %s530
      %s532 = sshll.u32 [#allocation8], 4
      %s533 = int_to_ptr.vmem [resolvable:$true] %s532
      %538 = dma.vmem_to_hbm [thread:$0]  %s533, 256, %s3, [#allocation4], 128, 128, 8
    $region29: #{tpu_custom_call.1} parent=1 // pred_fallthru
      _
    // Predicated region
    $region30: #{tpu_custom_call.1} parent=1 // pred_check
      _
    $region31: #{tpu_custom_call.1} parent=1 // pred_check_branch
      %540 = sbr.rel (0) target = $region33
    $region32: #{tpu_custom_call.1} parent=1 // pred_region
      %541 = dma.done [#allocation4], 256
    $region33: #{tpu_custom_call.1} parent=1 // pred_fallthru
      _
    %542 = vsyncpa [#allocation3], 1
    %543 = vsyncpa [#allocation6], 1
    %544 = vsyncpa [#allocation4], 1

</llo_original>
